<compile_context>
chip_gen: v6e
topology: v6e:2x2x1
jax: 0.10.0
libtpu: 0.0.40
codegen_flags: <defaults>
</compile_context>

<pallas_src>
import math

import jax
import jax.numpy as jnp
from jax.experimental import pallas as pl
from jax.experimental.pallas import tpu as pltpu

_LANE = 128


# ---------------------------------------------------------------------------
# Helpers
# ---------------------------------------------------------------------------

def _sublane_multiple(dtype) -> int:
    """Dtype-native row granularity: 8 for 32-bit, 16 for 16-bit, 32 for 8-bit."""
    return {4: 8, 2: 16, 1: 32}.get(jnp.dtype(dtype).itemsize, 8)


def _vmem_budgets():
    """(per-step tile budget, vmem_limit_bytes) — generation aware.

    v5e/v6e (128 MiB VMEM): larger tiles amortize the ~0.35us/step overhead.
    v7x (64 MiB physical, 32 MiB default scoped, 2 TCs each double-buffering)
    or unknown: stay conservative.
    """
    cap = None
    try:
        cap = getattr(pltpu.get_tpu_info(), "vmem_capacity_bytes", None)
    except Exception:
        cap = None
    if cap is not None and cap >= 96 * 1024 * 1024:      # v5e / v6e
        return 24 * 1024 * 1024, 64 * 1024 * 1024
    return 12 * 1024 * 1024, 32 * 1024 * 1024            # v7x / unknown


def _factor_rows_lanes(total, sub):
    """Factor a flat element count into a lane-dense (rows, lanes) slab."""
    for lanes in (1024, 512, 256, 128):                   # prefer sublane-full rows
        if total % lanes == 0 and (total // lanes) % sub == 0:
            return total // lanes, lanes
    for lanes in (1024, 512, 256, 128):
        if total % lanes == 0:
            return total // lanes, lanes
    return None


def _flatten_lane_dense(a, sub):
    """Contiguous reshape into a lane-dense 2D slab; pads the flat element count
    up to a multiple of sub*128 when required (caller slices the pad off)."""
    total = a.size
    fac = _factor_rows_lanes(total, sub)
    if fac is None:
        unit = sub * _LANE
        padded = -(-total // unit) * unit
        a = jnp.pad(a.reshape(-1), (0, padded - total))
        fac = _factor_rows_lanes(padded, sub)
    rows, lanes = fac
    return a.reshape(rows, lanes), rows, lanes


def _prefix_len(x_shape, c_shape):
    """Number of leading x dims that c conditions if c == x.shape[:k] (+ trailing
    size-1 dims); otherwise None."""
    cs = list(c_shape)
    while cs and cs[-1] == 1:
        cs.pop()
    k = len(cs)
    if k <= len(x_shape) and tuple(cs) == tuple(x_shape[:k]):
        return k
    return None


def _pick_tm(rows, row_bytes, sub, budget, block_rows):
    """Row-tile size: sublane-aligned, budget-bound, and (when auto) capped so the
    parallel row axis keeps >=2 (ideally >=4) grid steps for v7x megacore."""
    if block_rows is None:
        block_rows = max(sub, (budget // max(row_bytes, 1)) // sub * sub)
        if rows >= 4 * sub:
            block_rows = min(block_rows, max(sub, (rows // 4) // sub * sub))
        elif rows >= 2 * sub:
            block_rows = min(block_rows, max(sub, (rows // 2) // sub * sub))
    tm = min(block_rows, rows)
    if tm < rows:
        tm = max(sub, (tm // sub) * sub)
    return tm


def _make_residual_kernel(fn):
    def kernel(x_ref, c_ref, o_ref):
        x = x_ref[...]
        c = c_ref[...]           # (tm, lanes), (tm, 1) or (1, 1) — jnp broadcasts
        # fn traced into the kernel (VPU/EUP); residual add fused -> one HBM pass.
        o_ref[...] = (fn(x, c) + x).astype(o_ref.dtype)
    return kernel


# ---------------------------------------------------------------------------
# Public entry points
# ---------------------------------------------------------------------------

def residual_forward(fn, x, c, *, block_rows=None, vmem_limit_bytes=None,
                     donate_x=False):
    """Pallas TPU Residual: fn(x, c) + x, with tile-local fn fused in-kernel.

    `c` may be x-shaped, a scalar, or condition a prefix of x's dims
    (e.g. (B, C) or (B, C, 1, 1) against (B, C, H, W)); in the prefix case
    c is streamed small and broadcast inside the kernel.
    """
    x = jnp.asarray(x)
    c = jnp.asarray(c)
    orig_shape = x.shape
    total = x.size
    itemsize = jnp.dtype(x.dtype).itemsize
    sub = max(_sublane_multiple(x.dtype), _sublane_multiple(c.dtype))
    budget, default_limit = _vmem_budgets()
    if vmem_limit_bytes is None:
        vmem_limit_bytes = default_limit

    pad_slice = False
    k = _prefix_len(x.shape, c.shape)

    if c.size == 1:
        # Scalar conditioning: c lives in a single (1, 1) block, broadcast in-kernel.
        x2, rows, lanes = _flatten_lane_dense(x, sub)
        pad_slice = rows * lanes != total
        c2 = c.reshape(1, 1)
        row_bytes = 2 * (2 * lanes * itemsize)
        tm = _pick_tm(rows, row_bytes, sub, budget, block_rows)
        c_spec = pl.BlockSpec((1, 1), lambda i: (0, 0))
    elif (k is not None and k > 0 and math.prod(x.shape[k:]) > 1
          and sub * (2 * math.prod(x.shape[k:]) * itemsize
                     + jnp.dtype(c.dtype).itemsize) * 2 <= vmem_limit_bytes):
        # Prefix conditioning (the common BBDM case): stream c as a (tm, 1) column
        # -> ~2N instead of ~3N HBM bytes.
        rows = math.prod(x.shape[:k])
        lanes = math.prod(x.shape[k:])
        x2 = x.reshape(rows, lanes)
        c2 = c.reshape(rows, 1)
        row_bytes = 2 * (2 * lanes * itemsize + jnp.dtype(c.dtype).itemsize)
        tm = _pick_tm(rows, row_bytes, sub, budget, block_rows)
        c_spec = pl.BlockSpec((tm, 1), lambda i: (i, 0))
    else:
        # Full-shape conditioning (or a broadcast pattern we don't specialize).
        # TODO(synk): non-prefix broadcast patterns are materialized to x's shape
        # here, paying the full c read bandwidth.
        if c.shape != x.shape:
            c = jnp.broadcast_to(c, x.shape)
        x2, rows, lanes = _flatten_lane_dense(x, sub)
        c2, _, _ = _flatten_lane_dense(c, sub)
        pad_slice = rows * lanes != total
        row_bytes = 2 * (2 * lanes * itemsize + lanes * jnp.dtype(c.dtype).itemsize)
        tm = _pick_tm(rows, row_bytes, sub, budget, block_rows)
        c_spec = pl.BlockSpec((tm, lanes), lambda i: (i, 0))

    grid = (pl.cdiv(rows, tm),)
    x_spec = pl.BlockSpec((tm, lanes), lambda i: (i, 0))

    out_bytes = rows * lanes * itemsize
    cost = pl.CostEstimate(
        flops=5 * rows * lanes,
        transcendentals=rows * lanes,
        bytes_accessed=int(out_bytes * 2
                           + c2.shape[0] * c2.shape[1] * jnp.dtype(c2.dtype).itemsize),
    )

    out2 = pl.pallas_call(
        _make_residual_kernel(fn),
        out_shape=jax.ShapeDtypeStruct((rows, lanes), x.dtype),
        grid=grid,
        in_specs=[x_spec, c_spec],
        out_specs=x_spec,
        input_output_aliases=({0: 0} if donate_x else {}),
        compiler_params=pltpu.CompilerParams(
            dimension_semantics=("parallel",),   # shards rows across both TCs on v7x
            vmem_limit_bytes=vmem_limit_bytes,
        ),
        cost_estimate=cost,
    )(x2, c2)

    if pad_slice:
        return out2.reshape(-1)[:total].reshape(orig_shape)
    return out2.reshape(orig_shape)


def residual_add(x, y, **kwargs):
    """SLOW-PATH fallback: y = fn(x, c) was precomputed elsewhere; returns y + x.

    Prefer computing `fn(x, c) + x` directly in plain JAX for non-fusable fn
    (XLA fuses the add into fn's epilogue with ~zero extra HBM traffic); this
    separate pass re-reads x and y and writes out (~3N extra bytes).
    """
    return residual_forward(lambda _x, _y: _y, x, y, **kwargs)


def demo_fn(x, c):
    """Stand-in for the wrapped sub-module: a conditioned elementwise block
    (exact erf-GELU gate, matching torch.nn.functional.gelu's default)."""
    inv_sqrt2 = jnp.float32(0.7071067811865476)
    gelu_x = 0.5 * x * (1.0 + jax.lax.erf(x * inv_sqrt2))
    return gelu_x * (1.0 + c)


if __name__ == "__main__":
    B, C, H, W = 2, 8, 16, 16
    key = jax.random.PRNGKey(0)
    kx, kc, ks = jax.random.split(key, 3)
    x = jax.random.normal(kx, (B, C, H, W), dtype=jnp.float32)

    # (1) Small conditioning (B, C, 1, 1): fused low-bandwidth path, multi-step grid.
    c_small = jax.random.normal(kc, (B, C, 1, 1), dtype=jnp.float32)
    out1 = jax.block_until_ready(residual_forward(demo_fn, x, c_small))
    ref1 = demo_fn(x, c_small) + x
    assert out1.shape == x.shape, out1.shape
    assert jnp.allclose(out1, ref1, atol=1e-5, rtol=1e-5), "small-c mismatch"

    # (2) Full-shape conditioning: both operands streamed.
    c_full = jax.random.normal(ks, (B, C, H, W), dtype=jnp.float32)
    out2 = jax.block_until_ready(residual_forward(demo_fn, x, c_full, block_rows=8))
    ref2 = demo_fn(x, c_full) + x
    assert jnp.allclose(out2, ref2, atol=1e-5, rtol=1e-5), "full-c mismatch"

    # (3) Odd-sized input exercises the pad-and-slice lane-dense path.
    x_odd = jax.random.normal(kx, (3, 5, 7), dtype=jnp.float32)
    c_odd = jax.random.normal(kc, (3, 5, 7), dtype=jnp.float32)
    out3 = jax.block_until_ready(residual_forward(demo_fn, x_odd, c_odd))
    ref3 = demo_fn(x_odd, c_odd) + x_odd
    assert jnp.allclose(out3, ref3, atol=1e-5, rtol=1e-5), "padded-path mismatch"

    # (4) Fallback path for precomputed fn output (documented slow path).
    y = demo_fn(x, c_full)
    out4 = jax.block_until_ready(residual_add(x, y))
    assert jnp.allclose(out4, ref2, atol=1e-5, rtol=1e-5), "residual_add mismatch"

    print("KERNEL_OK")
</pallas_src>

<mosaic_0001>
module attributes {stable_mosaic.version = 11 : i64} {
  func.func @kernel(%arg0: i32, %arg1: memref<8x256xf32, #tpu.memory_space<vmem>>, %arg2: memref<8x1xf32, #tpu.memory_space<vmem>>, %arg3: memref<8x256xf32, #tpu.memory_space<vmem>>) attributes {dimension_semantics = [#tpu.dimension_semantics<parallel>], iteration_bounds = array<i64: 2>, scalar_prefetch = 0 : i64, scratch_operands = 0 : i64, tpu.core_type = #tpu.core_type<tc>, window_params = [{transform_indices = @transform_0, window_bounds = array<i64: 8, 256>}, {transform_indices = @transform_1, window_bounds = array<i64: 8, 1>}, {transform_indices = @transform_2, window_bounds = array<i64: 8, 256>}]} {
    %c0 = arith.constant 0 : index
    %c0_0 = arith.constant 0 : index
    %0 = vector.load %arg1[%c0, %c0_0] : memref<8x256xf32, #tpu.memory_space<vmem>>, vector<8x256xf32>
    %c0_1 = arith.constant 0 : index
    %c0_2 = arith.constant 0 : index
    %1 = vector.load %arg2[%c0_1, %c0_2] : memref<8x1xf32, #tpu.memory_space<vmem>>, vector<8x1xf32>
    %cst = arith.constant 5.000000e-01 : f32
    %2 = vector.broadcast %cst : f32 to vector<8x256xf32>
    %3 = arith.mulf %2, %0 : vector<8x256xf32>
    %cst_3 = arith.constant 0.707106769 : f32
    %4 = vector.broadcast %cst_3 : f32 to vector<8x256xf32>
    %5 = arith.mulf %0, %4 : vector<8x256xf32>
    %6 = math.erf %5 : vector<8x256xf32>
    %cst_4 = arith.constant 1.000000e+00 : f32
    %7 = vector.broadcast %cst_4 : f32 to vector<8x256xf32>
    %8 = arith.addf %7, %6 : vector<8x256xf32>
    %9 = arith.mulf %3, %8 : vector<8x256xf32>
    %cst_5 = arith.constant 1.000000e+00 : f32
    %10 = vector.broadcast %cst_5 : f32 to vector<8x1xf32>
    %11 = arith.addf %10, %1 : vector<8x1xf32>
    %12 = vector.broadcast %11 : vector<8x1xf32> to vector<8x256xf32>
    %13 = arith.mulf %9, %12 : vector<8x256xf32>
    %14 = arith.addf %13, %0 : vector<8x256xf32>
    %c0_6 = arith.constant 0 : index
    %c0_7 = arith.constant 0 : index
    %15 = vector.load %arg3[%c0_6, %c0_7] : memref<8x256xf32, #tpu.memory_space<vmem>>, vector<8x256xf32>
    tpu.vector_store %arg3[%c0_6, %c0_7], %14 {strides = array<i32>} : memref<8x256xf32, #tpu.memory_space<vmem>>, vector<8x256xf32>,
    return
  }
  func.func @transform_0(%arg0: i32) -> (i32, i32) {
    %c0_i32 = arith.constant 0 : i32
    %c0_i32_0 = arith.constant 0 : i32
    return %arg0, %c0_i32 : i32, i32
  }
  func.func @transform_1(%arg0: i32) -> (i32, i32) {
    %c0_i32 = arith.constant 0 : i32
    %c0_i32_0 = arith.constant 0 : i32
    return %arg0, %c0_i32 : i32, i32
  }
  func.func @transform_2(%arg0: i32) -> (i32, i32) {
    %c0_i32 = arith.constant 0 : i32
    %c0_i32_0 = arith.constant 0 : i32
    return %arg0, %c0_i32 : i32, i32
  }
}

</mosaic_0001>

<llo_original>
// kernel: tpu_custom_call.1
$region0: #{tpu_custom_call.1}
  #allocation0 [shape = 'u32[]', space=smem, size = 0x4, offset = 0x4, fixed_abs, tag = 'smem constant byte address 0x4 - core index']
  #allocation1 [shape = 'u32[144,128]{1,0:T(1,128)}', space=vmem, size = 0x12000, scoped, tag = 'internal scratch']
  %s0 = inlined_call_operand.hbm [shape: f32[16,256], index: 0, kind: input, shape index: {}]
  %s1 = inlined_call_operand.vmem [shape: f32[16,1], index: 1, kind: input, shape index: {}]
  %s2 = inlined_call_operand.hbm [shape: f32[16,256], index: 2, kind: output, shape index: {}]
  %s3 = sld [smem:[#allocation0]]
  $region45: #{tpu_custom_call.1} parent=0
    _
  %s5 = ssub.s32 1, %s3
  %s6 = scalar_select 0, %s5, %s3
  $region1: #{tpu_custom_call.1} parent=0
    #allocation2 [shape = 'u8[16384]{0}', space=vmem, size = 0x4000, scoped, tag = 'input window, operand 0']
    #allocation3 [shape = 's32[2]{0}', space=sflag, size = 0x8, scoped, tag = 'scoped memory for tpu_custom_call.1']
    #allocation4 [shape = 's32[2]{0}', space=sflag, size = 0x8, scoped, tag = 'scoped memory for tpu_custom_call.1']
    #allocation5 [shape = 'u8[16384]{0}', space=vmem, size = 0x4000, scoped, tag = 'output window, operand 0']
    %7 = vsyncpa [#allocation3], 0
    %s8 = scalar_lea.sflag [#allocation3], 1
    %9 = vsyncpa %s8, 0
    %10 = vsyncpa [#allocation4], 0
    %s11 = scalar_lea.sflag [#allocation4], 1
    %12 = vsyncpa %s11, 0
    loop: start=0, step=1, limit=4
    $region2: #{tpu_custom_call.1} parent=1 // loop_pre_header
      _
    $region3: #{tpu_custom_call.1} parent=1 // loop_header
      %s14 = sphi 0, %s18
      %p15 = scmp.ge.s32.totalorder %s14, 4
      %s24 = sphi 0, %s26
      %s27 = sphi 0, %s24
      %s28 = sphi 0, %s27
      %s44 = sphi 0, %s28
      %s50 = sphi 0, %s52
      %s53 = sphi 0, %s50
      %s54 = sphi 0, %s53
      %s70 = sphi 0, %s54
      %s76 = sphi 0, %s78
      %s79 = sphi 0, %s76
      %s80 = sphi 0, %s79
      %s96 = sphi 0, %s80
    $region4: #{tpu_custom_call.1} parent=1 // loop_header_branch
      %17 = sbr.rel (%p15) target = $region8
    $region5: #{tpu_custom_call.1} parent=1 // loop_body
      %s19 = ssub.s32 %s14, 1
      %s20 = ssub.s32 %s14, 2
      %s21 = sadd.s32 %s14, 1
      %s22 = ssub.s32 %s14, %s21
      %p23 = scmp.eq.s32.totalorder %s22, 0
      %s25 = sadd.s32 %s24, 1
      %s26 = scalar_select %p23, %s24, %s25
      %p29 = pneg %p23
      %p30 = scmp.eq.s32.totalorder %s14, 1
      %p31 = por %p29, %p30
      %p32 = scmp.ne.s32.totalorder %s24, %s27
      %p33 = scmp.eq.s32.totalorder %s14, 0
      %p34 = por %p32, %p33
      %p35 = scmp.ne.s32.totalorder %s24, %s27
      %p36 = scmp.eq.s32.totalorder %s19, 1
      %p37 = por %p35, %p36
      %p38 = scmp.ne.s32.totalorder %s27, %s28
      %p39 = scmp.eq.s32.totalorder %s19, 0
      %p40 = por %p38, %p39
      %p41 = scmp.ne.s32.totalorder %s27, %s28
      %p42 = scmp.eq.s32.totalorder %s20, 1
      %p43 = por %p41, %p42
      %p45 = scmp.ne.s32.totalorder %s28, %s44
      %p46 = scmp.eq.s32.totalorder %s20, 0
      %p47 = por %p45, %p46
      %s48 = ssub.s32 %s14, %s21
      %p49 = scmp.eq.s32.totalorder %s48, 0
      %s51 = sadd.s32 %s50, 1
      %s52 = scalar_select %p49, %s50, %s51
      %p55 = pneg %p49
      %p56 = scmp.eq.s32.totalorder %s14, 1
      %p57 = por %p55, %p56
      %p58 = scmp.ne.s32.totalorder %s50, %s53
      %p59 = scmp.eq.s32.totalorder %s14, 0
      %p60 = por %p58, %p59
      %p61 = scmp.ne.s32.totalorder %s50, %s53
      %p62 = scmp.eq.s32.totalorder %s19, 1
      %p63 = por %p61, %p62
      %p64 = scmp.ne.s32.totalorder %s53, %s54
      %p65 = scmp.eq.s32.totalorder %s19, 0
      %p66 = por %p64, %p65
      %p67 = scmp.ne.s32.totalorder %s53, %s54
      %p68 = scmp.eq.s32.totalorder %s20, 1
      %p69 = por %p67, %p68
      %p71 = scmp.ne.s32.totalorder %s54, %s70
      %p72 = scmp.eq.s32.totalorder %s20, 0
      %p73 = por %p71, %p72
      %s74 = ssub.s32 %s14, %s21
      %p75 = scmp.eq.s32.totalorder %s74, 0
      %s77 = sadd.s32 %s76, 1
      %s78 = scalar_select %p75, %s76, %s77
      %p81 = pneg %p75
      %p82 = scmp.eq.s32.totalorder %s14, 1
      %p83 = por %p81, %p82
      %p84 = scmp.ne.s32.totalorder %s76, %s79
      %p85 = scmp.eq.s32.totalorder %s14, 0
      %p86 = por %p84, %p85
      %p87 = scmp.ne.s32.totalorder %s76, %s79
      %p88 = scmp.eq.s32.totalorder %s19, 1
      %p89 = por %p87, %p88
      %p90 = scmp.ne.s32.totalorder %s79, %s80
      %p91 = scmp.eq.s32.totalorder %s19, 0
      %p92 = por %p90, %p91
      %p93 = scmp.ne.s32.totalorder %s79, %s80
      %p94 = scmp.eq.s32.totalorder %s20, 1
      %p95 = por %p93, %p94
      %p97 = scmp.ne.s32.totalorder %s80, %s96
      %p98 = scmp.eq.s32.totalorder %s20, 0
      %p99 = por %p97, %p98
      %p100 = scmp.le.s32.totalorder 1, %s14
      %p101 = scmp.lt.s32.totalorder %s14, 3
      %p102 = pnand %p100, %p101
      %p103 = pneg %p102
      // Predicated region
      $region9: #{tpu_custom_call.1} parent=5 // pred_check
        _
      $region10: #{tpu_custom_call.1} parent=5 // pred_check_branch
        %105 = sbr.rel (%p102) target = $region12
      $region11: #{tpu_custom_call.1} parent=5 // pred_region
        %s106 = ssub.s32 %s14, 1
      $region12: #{tpu_custom_call.1} parent=5 // pred_fallthru
        _
      %p107 = scmp.lt.s32.totalorder %s14, 2
      // Predicated region
      $region13: #{tpu_custom_call.1} parent=5 // pred_check
        %p108 = pneg %p107
      $region14: #{tpu_custom_call.1} parent=5 // pred_check_branch
        %110 = sbr.rel (%p108) target = $region16
      $region15: #{tpu_custom_call.1} parent=5 // pred_region
        // Predicated region
        $region17: #{tpu_custom_call.1} parent=15 // pred_check
          %p111 = pneg %p34
        $region18: #{tpu_custom_call.1} parent=15 // pred_check_branch
          %113 = sbr.rel (%p111) target = $region20
        $region19: #{tpu_custom_call.1} parent=15 // pred_region
          %s114 = sand.u32 %s24, 1
          %s115 = scalar_lea.sflag [#allocation3], %s114
          %s116 = sand.u32 %s24, 1
          %s117 = smul.addr %s116, 16
          %s118 = scalar_lea.vmem [#allocation2], %s117
          %s120 = ssub.s32 256, 256
          %121 = vsyncadd %s115, %s120
          %s122 = smul.addr %s14, 2
          %s123 = smul.addr %s122, 128
          %s124 = scalar_lea.hbm %s0, %s123
          %s126 = sshll.u32 %s118, 4
          %s127 = int_to_ptr.vmem [resolvable:$true] %s126
          %129 = dma.hbm_to_vmem [thread:$0]  %s124, 256, %s127, %s115
        $region20: #{tpu_custom_call.1} parent=15 // pred_fallthru
          _
        // Predicated region
        $region21: #{tpu_custom_call.1} parent=15 // pred_check
          %p130 = pneg %p60
        $region22: #{tpu_custom_call.1} parent=15 // pred_check_branch
          %132 = sbr.rel (%p130) target = $region24
        $region23: #{tpu_custom_call.1} parent=15 // pred_region
          %p133 = scmp.lt.s32.totalorder %s14, 1
          %s134 = scalar_select %p133, %s14, 1
          %s135 = smul.addr %s134, 8
          %s136 = scalar_lea.vmem %s1, %s135
        $region24: #{tpu_custom_call.1} parent=15 // pred_fallthru
          _
      $region16: #{tpu_custom_call.1} parent=5 // pred_fallthru
        _
      %p137 = scmp.le.s32.totalorder 1, %s14
      %p138 = scmp.lt.s32.totalorder %s14, 3
      %p139 = pnand %p137, %p138
      %p140 = pneg %p139
      // Predicated region
      $region25: #{tpu_custom_call.1} parent=5 // pred_check
        _
      $region26: #{tpu_custom_call.1} parent=5 // pred_check_branch
        %142 = sbr.rel (%p139) target = $region28
      $region27: #{tpu_custom_call.1} parent=5 // pred_region
        %s143 = ssub.s32 %s14, 1
        %s144 = sand.u32 %s27, 1
        %s145 = scalar_lea.sflag [#allocation3], %s144
        %s146 = sand.u32 %s27, 1
        %s147 = smul.addr %s146, 16
        %s148 = scalar_lea.vmem [#allocation2], %s147
        // Predicated region
        $region29: #{tpu_custom_call.1} parent=27 // pred_check
          %p149 = pneg %p40
        $region30: #{tpu_custom_call.1} parent=27 // pred_check_branch
          %151 = sbr.rel (%p149) target = $region32
        $region31: #{tpu_custom_call.1} parent=27 // pred_region
          %152 = dma.done %s145, 256
        $region32: #{tpu_custom_call.1} parent=27 // pred_fallthru
          _
        %s153 = sand.u32 %s27, 1
        %s154 = scalar_lea.sflag [#allocation3], %s153
        %s155 = sand.u32 %s27, 1
        %s156 = smul.addr %s155, 16
        %s157 = scalar_lea.vmem [#allocation2], %s156
        %p158 = pneg %p40
        %p159 = pneg %p37
        %p160 = scmp.lt.s32.totalorder %s19, 1
        %s161 = scalar_select %p160, %s19, 1
        %s162 = smul.addr %s161, 8
        %s163 = scalar_lea.vmem %s1, %s162
        %p164 = pneg %p66
        %p165 = pneg %p63
        %p166 = pneg %p92
        %p167 = pneg %p89
        %s168 = sand.u32 %s79, 1
        %s169 = scalar_lea.sflag [#allocation4], %s168
        %s170 = sand.u32 %s79, 1
        %s171 = smul.addr %s170, 16
        %s172 = scalar_lea.vmem [#allocation5], %s171
        %p173 = scmp.lt.s32.totalorder %s19, 1
        %s174 = scalar_select %p173, %s19, 1
        %s175 = smul.addr %s174, 8
        %s176 = scalar_lea.vmem %s1, %s175
        %v177 = vld [vmem:[%s148] sm:$0xff]
        %v178 = vld [vmem:[%s148 + $0x8] sm:$0xff]
        %v179 = vld [vmem:[%s176] sm:$0xff]
        %v180 = vmul.f32 %v177, 0.5
        %v181 = vmul.f32 %v178, 0.5
        %v182 = vmul.f32 %v177, 0.70710677
        %v183 = vmul.f32 %v178, 0.70710677
        %v184 = verf.f32.pop %v182
        %v185 = verf.f32.pop %v183
        %v186 = vadd.f32 %v184, 1.0
        %v187 = vadd.f32 %v185, 1.0
        %v188 = vmul.f32 %v180, %v186
        %v189 = vmul.f32 %v181, %v187
        %v190 = vadd.f32 %v179, 1.0
        %192 = vset.pattern.permute.xlu0 0
        %193 = vperm.xlu0 %192, %v190
        %v194 = vpop.permute.xlu0 %193
        %v196 = vmul.f32 %v188, %v194
        %v197 = vmul.f32 %v189, %v194
        %v198 = vadd.f32 %v196, %v177
        %v199 = vadd.f32 %v197, %v178
        %200 = vst [vmem:[%s172] sm:$0xff] %v198
        %201 = vst [vmem:[%s172 + $0x8] sm:$0xff] %v199
        %s202 = sand.u32 %s79, 1
        %s203 = scalar_lea.sflag [#allocation4], %s202
        %s204 = sand.u32 %s79, 1
        %s205 = smul.addr %s204, 16
        %s206 = scalar_lea.vmem [#allocation5], %s205
        // Predicated region
        $region33: #{tpu_custom_call.1} parent=27 // pred_check
          %p207 = pneg %p89
        $region34: #{tpu_custom_call.1} parent=27 // pred_check_branch
          %209 = sbr.rel (%p207) target = $region36
        $region35: #{tpu_custom_call.1} parent=27 // pred_region
          %s211 = ssub.s32 256, 256
          %212 = vsyncadd %s203, %s211
          %s213 = smul.addr %s19, 2
          %s214 = smul.addr %s213, 128
          %s215 = scalar_lea.hbm %s2, %s214
          %s217 = sshll.u32 %s206, 4
          %s218 = int_to_ptr.vmem [resolvable:$true] %s217
          %220 = dma.vmem_to_hbm [thread:$0]  %s218, 256, %s215, %s203
        $region36: #{tpu_custom_call.1} parent=27 // pred_fallthru
          _
      $region28: #{tpu_custom_call.1} parent=5 // pred_fallthru
        _
      %p221 = scmp.le.s32.totalorder 2, %s14
      // Predicated region
      $region37: #{tpu_custom_call.1} parent=5 // pred_check
        %p222 = pneg %p221
      $region38: #{tpu_custom_call.1} parent=5 // pred_check_branch
        %224 = sbr.rel (%p222) target = $region40
      $region39: #{tpu_custom_call.1} parent=5 // pred_region
        %s225 = ssub.s32 %s14, 2
        // Predicated region
        $region41: #{tpu_custom_call.1} parent=39 // pred_check
          %p226 = pneg %p95
        $region42: #{tpu_custom_call.1} parent=39 // pred_check_branch
          %228 = sbr.rel (%p226) target = $region44
        $region43: #{tpu_custom_call.1} parent=39 // pred_region
          %s229 = sand.u32 %s80, 1
          %s230 = scalar_lea.sflag [#allocation4], %s229
          %s231 = sand.u32 %s80, 1
          %s232 = smul.addr %s231, 16
          %s233 = scalar_lea.vmem [#allocation5], %s232
          %234 = dma.done %s230, 256
        $region44: #{tpu_custom_call.1} parent=39 // pred_fallthru
          _
      $region40: #{tpu_custom_call.1} parent=5 // pred_fallthru
        _
    $region6: #{tpu_custom_call.1} parent=1 // loop_footer
      %s18 = sadd.s32 1, %s14
    $region7: #{tpu_custom_call.1} parent=1 // loop_footer_branch
      %13 = sbr.rel target = $region3
    $region8: #{tpu_custom_call.1} parent=1 // loop_exit
      _
    %235 = vsyncpa [#allocation3], 1
    %s236 = scalar_lea.sflag [#allocation3], 1
    %237 = vsyncpa %s236, 1
    %238 = vsyncpa [#allocation4], 1
    %s239 = scalar_lea.sflag [#allocation4], 1
    %240 = vsyncpa %s239, 1

</llo_original>
